<compile_context>
chip_gen: v6e
topology: v6e:2x2x1
jax: 0.10.0
libtpu: 0.0.40
codegen_flags: <defaults>
</compile_context>

<pallas_src>
import jax
import jax.numpy as jnp
from jax.experimental import pallas as pl
from jax.experimental.pallas import tpu as pltpu


def _hbm_copy_kernel(src_ref, out_ref, sem):
    """Single HBM->HBM DMA: no VMEM staging, no vector load/store traffic."""
    cp = pltpu.make_async_copy(src_ref, out_ref, sem)
    cp.start()
    cp.wait()


def materialized_copy(src: jax.Array) -> jax.Array:
    """Copy `src` into a fresh HBM buffer with one DMA-only Pallas call."""
    return pl.pallas_call(
        _hbm_copy_kernel,
        out_shape=jax.ShapeDtypeStruct(src.shape, src.dtype),
        in_specs=[pl.BlockSpec(memory_space=pl.ANY)],
        out_specs=pl.BlockSpec(memory_space=pl.ANY),
        scratch_shapes=[pltpu.SemaphoreType.DMA(())],
        cost_estimate=pl.CostEstimate(
            flops=0, transcendentals=0, bytes_accessed=2 * src.size * src.dtype.itemsize
        ),
    )(src)


def _apply_encoder_layer(src: jax.Array) -> jax.Array:
    """One encoder layer.

    The reference encoder_layer defines no computation, so this is an exact
    identity: return the input with zero HBM traffic and zero kernel launches.
    # TODO(synk): real self-attention + FFN Pallas kernel goes here.
    """
    return src


def encoder_forward(src: jax.Array, num_layers: int, *, materialize: bool = False) -> jax.Array:
    """Pallas equivalent of Encoder.forward.

    Applies `num_layers` (identity) encoder layers. With `materialize=True`,
    the result is copied into a fresh HBM buffer by exactly one DMA-only
    kernel launch (regardless of num_layers); otherwise no kernel runs at all.
    """
    output = src
    for _ in range(num_layers):
        output = _apply_encoder_layer(output)
    if materialize:
        output = materialized_copy(output)
    return output


if __name__ == "__main__":
    key = jax.random.PRNGKey(0)
    B, N, D = 2, 8, 32  # [batch, seq, hidden] per the module's forward contract
    num_layers = 2
    src = jax.random.normal(key, (B, N, D), dtype=jnp.float32)

    # Default path: identity layers collapsed, zero kernel launches / HBM traffic.
    out_fast = encoder_forward(src, num_layers)
    out_fast = jax.block_until_ready(out_fast)

    # Materialized path: exactly one HBM->HBM DMA copy (exercises the kernel).
    out_copy = encoder_forward(src, num_layers, materialize=True)
    out_copy = jax.block_until_ready(out_copy)

    # Sanity checks: shape/dtype preserved, identity semantics hold.
    assert out_fast.shape == src.shape and out_fast.dtype == src.dtype
    assert out_copy.shape == src.shape and out_copy.dtype == src.dtype
    assert bool(jnp.allclose(out_fast, src)), "identity encoder forward mismatch (fast path)"
    assert bool(jnp.allclose(out_copy, src)), "identity encoder forward mismatch (copy path)"

    print("KERNEL_OK")
</pallas_src>

<mosaic_0001>
module attributes {stable_mosaic.version = 11 : i64} {
  func.func @_hbm_copy_kernel(%arg0: memref<2x8x32xf32, #tpu.memory_space<any>>, %arg1: memref<2x8x32xf32, #tpu.memory_space<any>>, %arg2: memref<!tpu.dma_semaphore, #tpu.memory_space<semaphore_mem>>) attributes {dimension_semantics = [], scalar_prefetch = 0 : i64, scratch_operands = 1 : i64, tpu.core_type = #tpu.core_type<tc>} {
    tpu.enqueue_dma source(%arg0 : memref<2x8x32xf32, #tpu.memory_space<any>>) target(%arg1 : memref<2x8x32xf32, #tpu.memory_space<any>>) target_semaphore(%arg2 : memref<!tpu.dma_semaphore, #tpu.memory_space<semaphore_mem>>)
    tpu.wait_dma2 semaphore(%arg2 : memref<!tpu.dma_semaphore, #tpu.memory_space<semaphore_mem>>) src(%arg0 : memref<2x8x32xf32, #tpu.memory_space<any>>) dst(%arg1 : memref<2x8x32xf32, #tpu.memory_space<any>>)
    return
  }
}

</mosaic_0001>

<llo_original>
// kernel: tpu_custom_call.1
$region0: #{tpu_custom_call.1}
  #allocation0 [shape = 'u32[]', space=smem, size = 0x4, offset = 0x4, fixed_abs, tag = 'smem constant byte address 0x4 - core index']
  #allocation1 [shape = 'u32[144,128]{1,0:T(1,128)}', space=vmem, size = 0x12000, scoped, tag = 'internal scratch']
  #allocation2 [shape = 's32[1]{0}', space=sflag, size = 0x4, scoped, tag = 'scratch operand']
  #allocation3 [shape = 's32[]', space=sflag, size = 0x4, offset = 0, fixed_abs, tag = 'sflag constant byte address 0x0 - dummy sync flag']
  #allocation4 [shape = 'u32[0]{0}', space=smem, size = 0, offset = 0, fixed_abs, tag = 'smem constant byte address 0x0 - null']
  %s0 = inlined_call_operand.hbm [shape: f32[2,8,32], index: 0, kind: input, shape index: {}]
  %s1 = inlined_call_operand.hbm [shape: f32[2,8,32], index: 1, kind: output, shape index: {}]
  %s2 = sld [smem:[#allocation0]]
  $region2: #{tpu_custom_call.1} parent=0
    _
  %s4 = ssub.s32 1, %s2
  %s5 = scalar_select 0, %s4, %s2
  %s7 = sshll.u32 1, 14
  %s8 = sxor.u32 4294967295, %s7
  %12 = dma.general %s0, 256, %s1, [#allocation2], 131072, [#allocation4], 0, 0
  %s13 = smul.u32 2, 8
  %s14 = smul.u32 %s13, 1
  %s15 = sshll.u32 %s14, 4
  %16 = dma.done [#allocation2], %s15
  %17 = vsyncmov [#allocation2]
  %s18 = vpop.sfrf %17
  %p19 = scmp.eq.s32.totalorder %s18, 0
  %p20 = pneg %p19
  %22 = shalt.err (%p20)

</llo_original>
